<compile_context>
chip_gen: v7x
topology: tpu7x:2x2x1
jax: 0.10.0
libtpu: 0.0.40
codegen_flags: <defaults>
</compile_context>

<pallas_src>
import functools

import jax
import jax.numpy as jnp
from jax.experimental import pallas as pl
from jax.experimental.pallas import tpu as pltpu


def _round_up(x, m):
    return (x + m - 1) // m * m


def _bigram_logits_kernel(idx_ref, table_ref, logits_ref):
    """Embedding lookup as one-hot @ padded table (MXU path)."""
    tile_bt, v_pad = logits_ref.shape
    idx = idx_ref[...]                                            # (tile_bt, 1) int32
    lane = jax.lax.broadcasted_iota(jnp.int32, (tile_bt, v_pad), 1)
    onehot = (lane == idx).astype(table_ref.dtype)                # (tile_bt, V_pad)
    logits_ref[...] = jnp.dot(
        onehot, table_ref[...], preferred_element_type=jnp.float32
    )


def _bigram_loss_kernel(idx_ref, tgt_ref, table_ref, logits_ref, rowloss_ref,
                        *, v_real):
    """Embedding lookup + per-row cross-entropy (padded lanes masked)."""
    tile_bt, v_pad = logits_ref.shape
    idx = idx_ref[...]                                            # (tile_bt, 1)
    tgt = tgt_ref[...]                                            # (tile_bt, 1)
    lane = jax.lax.broadcasted_iota(jnp.int32, (tile_bt, v_pad), 1)

    onehot = (lane == idx).astype(table_ref.dtype)                # (tile_bt, V_pad)
    logits = jnp.dot(onehot, table_ref[...],
                     preferred_element_type=jnp.float32)          # (tile_bt, V_pad)
    logits_ref[...] = logits

    # Stable logsumexp with padded lanes (>= v_real) masked to -inf.
    masked = jnp.where(lane < v_real, logits, -jnp.inf)
    m = jnp.max(masked, axis=-1, keepdims=True)                   # (tile_bt, 1)
    lse = m + jnp.log(jnp.sum(jnp.exp(masked - m), axis=-1, keepdims=True))
    # Target logit via select + reduce (no second one-hot materialized).
    tgt_logit = jnp.sum(jnp.where(lane == tgt, logits, 0.0),
                        axis=-1, keepdims=True)                   # (tile_bt, 1)
    rowloss_ref[...] = lse - tgt_logit                            # (tile_bt, 1)


@functools.partial(jax.jit, static_argnames=("has_targets",))
def _bigram_forward_jit(idx, table, targets, has_targets):
    B, T = idx.shape
    V = table.shape[0]
    BT = B * T

    # Lane-dense class dimension.
    V_pad = _round_up(V, 128)
    table_pad = jnp.pad(table.astype(jnp.float32),
                        ((0, V_pad - V), (0, V_pad - V)))

    # BT tiling: multiple of 8 sublanes, <= 512 rows per tile.
    tile_bt = min(512, _round_up(BT, 8))
    BT_pad = _round_up(BT, tile_bt)
    num_tiles = BT_pad // tile_bt

    idx2d = jnp.pad(idx.reshape(BT).astype(jnp.int32),
                    (0, BT_pad - BT)).reshape(BT_pad, 1)

    # VMEM budget: resident table + double-buffered per-tile blocks (+ slack).
    vmem_bytes = (V_pad * V_pad * 4
                  + 2 * tile_bt * V_pad * 4          # logits out
                  + 2 * tile_bt * 4 * 3)             # idx, tgt, rowloss
    compiler_params = pltpu.CompilerParams(
        dimension_semantics=("parallel",),
        vmem_limit_bytes=max(2 * vmem_bytes, 4 * 1024 * 1024),
    )

    idx_spec = pl.BlockSpec((tile_bt, 1), lambda i: (i, 0))
    table_spec = pl.BlockSpec((V_pad, V_pad), lambda i: (0, 0))
    logits_spec = pl.BlockSpec((tile_bt, V_pad), lambda i: (i, 0))
    rowloss_spec = pl.BlockSpec((tile_bt, 1), lambda i: (i, 0))

    if not has_targets:
        logits_flat = pl.pallas_call(
            _bigram_logits_kernel,
            out_shape=jax.ShapeDtypeStruct((BT_pad, V_pad), jnp.float32),
            grid=(num_tiles,),
            in_specs=[idx_spec, table_spec],
            out_specs=logits_spec,
            compiler_params=compiler_params,
        )(idx2d, table_pad)
        logits = logits_flat[:BT, :V].reshape(B, T, V)
        return logits, None

    tgt2d = jnp.pad(targets.reshape(BT).astype(jnp.int32),
                    (0, BT_pad - BT)).reshape(BT_pad, 1)

    logits_flat, rowloss = pl.pallas_call(
        functools.partial(_bigram_loss_kernel, v_real=V),
        out_shape=(
            jax.ShapeDtypeStruct((BT_pad, V_pad), jnp.float32),
            jax.ShapeDtypeStruct((BT_pad, 1), jnp.float32),
        ),
        grid=(num_tiles,),
        in_specs=[idx_spec, idx_spec, table_spec],
        out_specs=(logits_spec, rowloss_spec),
        compiler_params=compiler_params,
    )(idx2d, tgt2d, table_pad)

    logits = logits_flat[:BT, :V].reshape(B, T, V)
    loss = jnp.sum(rowloss[:BT, 0]) / jnp.float32(BT)
    # NOTE: PyTorch's forward returns logits reshaped to (B*T, C) when targets
    # are given; we keep the (B, T, C) view for downstream convenience.
    return logits, loss


def bigram_forward(idx, table, targets=None):
    """Mirrors BigramLanguageModel.forward(idx, targets)."""
    if targets is None:
        logits, _ = _bigram_forward_jit(idx, table, idx, has_targets=False)
        return logits, None
    return _bigram_forward_jit(idx, table, targets, has_targets=True)


def _reference(idx, table, targets):
    logits = table[idx]                                           # (B, T, V)
    B, T, V = logits.shape
    lf = logits.reshape(B * T, V)
    tf = targets.reshape(B * T)
    lse = jax.nn.logsumexp(lf, axis=-1)
    tgt_logit = jnp.take_along_axis(lf, tf[:, None], axis=-1)[:, 0]
    loss = jnp.mean(lse - tgt_logit)
    return logits, loss


def _check(B, T, V, key):
    k_tab, k_idx, k_tgt = jax.random.split(key, 3)
    # nn.Embedding default init is N(0, 1).
    table = jax.random.normal(k_tab, (V, V), dtype=jnp.float32)
    idx = jax.random.randint(k_idx, (B, T), 0, V, dtype=jnp.int32)
    targets = jax.random.randint(k_tgt, (B, T), 0, V, dtype=jnp.int32)

    logits, loss = bigram_forward(idx, table, targets)
    logits = jax.block_until_ready(logits)
    loss = jax.block_until_ready(loss)

    logits_nt, loss_nt = bigram_forward(idx, table, None)
    logits_nt = jax.block_until_ready(logits_nt)
    assert loss_nt is None

    ref_logits, ref_loss = _reference(idx, table, targets)
    assert logits.shape == (B, T, V)
    assert jnp.allclose(logits, ref_logits, atol=1e-5, rtol=1e-5)
    assert jnp.allclose(logits_nt, ref_logits, atol=1e-5, rtol=1e-5)
    assert jnp.allclose(loss, ref_loss, atol=1e-4, rtol=1e-4)


if __name__ == "__main__":
    key = jax.random.PRNGKey(0)
    k0, k1 = jax.random.split(key)

    # Small shapes matching the toy module (tiny-shakespeare-ish vocab).
    _check(B=2, T=8, V=65, key=k0)
    # Slightly larger run that exercises the BT grid (2 tiles of 512 rows).
    _check(B=8, T=128, V=65, key=k1)

    print("KERNEL_OK")
</pallas_src>

<mosaic_0001>
module attributes {stable_mosaic.version = 11 : i64} {
  func.func @_bigram_loss_kernel(%arg0: i32, %arg1: memref<16x1xi32, #tpu.memory_space<vmem>>, %arg2: memref<16x1xi32, #tpu.memory_space<vmem>>, %arg3: memref<128x128xf32, #tpu.memory_space<vmem>>, %arg4: memref<16x128xf32, #tpu.memory_space<vmem>>, %arg5: memref<16x1xf32, #tpu.memory_space<vmem>>) attributes {dimension_semantics = [#tpu.dimension_semantics<parallel>], iteration_bounds = array<i64: 1>, scalar_prefetch = 0 : i64, scratch_operands = 0 : i64, tpu.core_type = #tpu.core_type<tc>, window_params = [{transform_indices = @transform_0, window_bounds = array<i64: 16, 1>}, {transform_indices = @transform_1, window_bounds = array<i64: 16, 1>}, {pipeline_mode = #tpu.pipeline_mode<synchronous>, transform_indices = @transform_2, window_bounds = array<i64: 128, 128>}, {transform_indices = @transform_3, window_bounds = array<i64: 16, 128>}, {transform_indices = @transform_4, window_bounds = array<i64: 16, 1>}]} {
    %c0 = arith.constant 0 : index
    %c0_0 = arith.constant 0 : index
    %0 = vector.load %arg1[%c0, %c0_0] : memref<16x1xi32, #tpu.memory_space<vmem>>, vector<16x1xi32>
    %c0_1 = arith.constant 0 : index
    %c0_2 = arith.constant 0 : index
    %1 = vector.load %arg2[%c0_1, %c0_2] : memref<16x1xi32, #tpu.memory_space<vmem>>, vector<16x1xi32>
    %2 = tpu.iota {dimensions = array<i32: 1>} : vector<16x128xi32>
    %3 = vector.broadcast %0 : vector<16x1xi32> to vector<16x128xi32>
    %4 = arith.cmpi eq, %2, %3 : vector<16x128xi32>
    %5 = arith.extui %4 : vector<16x128xi1> to vector<16x128xi32>
    %6 = arith.sitofp %5 : vector<16x128xi32> to vector<16x128xf32>
    %c0_3 = arith.constant 0 : index
    %c0_4 = arith.constant 0 : index
    %7 = vector.load %arg3[%c0_3, %c0_4] : memref<128x128xf32, #tpu.memory_space<vmem>>, vector<128x128xf32>
    %cst = arith.constant dense<0.000000e+00> : vector<16x128xf32>
    %8 = tpu.matmul %6, %7, %cst {dimension_numbers = #tpu.dot_dimension_numbers<[1], [0], [0], [1], [0, 0, 1, 1], [], []>} : vector<16x128xf32>, vector<128x128xf32>, vector<16x128xf32> -> vector<16x128xf32>
    %c0_5 = arith.constant 0 : index
    %c0_6 = arith.constant 0 : index
    %9 = vector.load %arg4[%c0_5, %c0_6] : memref<16x128xf32, #tpu.memory_space<vmem>>, vector<16x128xf32>
    tpu.vector_store %arg4[%c0_5, %c0_6], %8 {strides = array<i32>} : memref<16x128xf32, #tpu.memory_space<vmem>>, vector<16x128xf32>,
    %c65_i32 = arith.constant 65 : i32
    %10 = vector.broadcast %c65_i32 : i32 to vector<16x128xi32>
    %11 = arith.cmpi slt, %2, %10 : vector<16x128xi32>
    %cst_7 = arith.constant 0xFF800000 : f32
    %12 = vector.broadcast %cst_7 : f32 to vector<16x128xf32>
    %13 = arith.select %11, %8, %12 : vector<16x128xi1>, vector<16x128xf32>
    %cst_8 = arith.constant dense<0xFF800000> : vector<16xf32>
    %14 = vector.multi_reduction <maximumf>, %13, %cst_8 [1] : vector<16x128xf32> to vector<16xf32>
    %15 = vector.shape_cast %14 : vector<16xf32> to vector<16x1xf32>
    %16 = vector.broadcast %15 : vector<16x1xf32> to vector<16x128xf32>
    %17 = arith.subf %13, %16 : vector<16x128xf32>
    %18 = math.exp %17 : vector<16x128xf32>
    %cst_9 = arith.constant dense<0.000000e+00> : vector<16xf32>
    %19 = vector.multi_reduction <add>, %18, %cst_9 [1] : vector<16x128xf32> to vector<16xf32>
    %20 = vector.shape_cast %19 : vector<16xf32> to vector<16x1xf32>
    %21 = math.log %20 : vector<16x1xf32>
    %22 = arith.addf %15, %21 : vector<16x1xf32>
    %23 = vector.broadcast %1 : vector<16x1xi32> to vector<16x128xi32>
    %24 = arith.cmpi eq, %2, %23 : vector<16x128xi32>
    %cst_10 = arith.constant 0.000000e+00 : f32
    %25 = vector.broadcast %cst_10 : f32 to vector<16x128xf32>
    %26 = arith.select %24, %8, %25 : vector<16x128xi1>, vector<16x128xf32>
    %cst_11 = arith.constant dense<0.000000e+00> : vector<16xf32>
    %27 = vector.multi_reduction <add>, %26, %cst_11 [1] : vector<16x128xf32> to vector<16xf32>
    %28 = vector.shape_cast %27 : vector<16xf32> to vector<16x1xf32>
    %29 = arith.subf %22, %28 : vector<16x1xf32>
    %c0_12 = arith.constant 0 : index
    %c0_13 = arith.constant 0 : index
    %30 = vector.load %arg5[%c0_12, %c0_13] : memref<16x1xf32, #tpu.memory_space<vmem>>, vector<16x1xf32>
    tpu.vector_store %arg5[%c0_12, %c0_13], %29 {strides = array<i32>} : memref<16x1xf32, #tpu.memory_space<vmem>>, vector<16x1xf32>,
    return
  }
  func.func @transform_0(%arg0: i32) -> (i32, i32) {
    %c0_i32 = arith.constant 0 : i32
    %c0_i32_0 = arith.constant 0 : i32
    return %arg0, %c0_i32 : i32, i32
  }
  func.func @transform_1(%arg0: i32) -> (i32, i32) {
    %c0_i32 = arith.constant 0 : i32
    %c0_i32_0 = arith.constant 0 : i32
    return %arg0, %c0_i32 : i32, i32
  }
  func.func @transform_2(%arg0: i32) -> (i32, i32) {
    %c0_i32 = arith.constant 0 : i32
    %c0_i32_0 = arith.constant 0 : i32
    %c0_i32_1 = arith.constant 0 : i32
    return %c0_i32, %c0_i32_0 : i32, i32
  }
  func.func @transform_3(%arg0: i32) -> (i32, i32) {
    %c0_i32 = arith.constant 0 : i32
    %c0_i32_0 = arith.constant 0 : i32
    return %arg0, %c0_i32 : i32, i32
  }
  func.func @transform_4(%arg0: i32) -> (i32, i32) {
    %c0_i32 = arith.constant 0 : i32
    %c0_i32_0 = arith.constant 0 : i32
    return %arg0, %c0_i32 : i32, i32
  }
}

</mosaic_0001>

<llo_original>
// kernel: _bigram_forward_jit.1
$region0: #{_bigram_forward_jit.1}
  #allocation0 [shape = 'u32[]', space=smem, size = 0x4, offset = 0x4, fixed_abs, tag = 'smem constant byte address 0x4 - core index']
  #allocation1 [shape = 'u32[144,128]{1,0:T(1,128)}', space=vmem, size = 0x12000, scoped, tag = 'internal scratch']
  %s0 = inlined_call_operand.vmem [shape: s32[16,1], index: 0, kind: input, shape index: {}]
  %s1 = inlined_call_operand.vmem [shape: s32[16,1], index: 1, kind: input, shape index: {}]
  %s2 = inlined_call_operand.vmem [shape: f32[128,128], index: 2, kind: input, shape index: {}]
  %s3 = inlined_call_operand.vmem [shape: f32[16,128], index: 3, kind: output, shape index: {0}]
  %s4 = inlined_call_operand.vmem [shape: f32[16,1], index: 4, kind: output, shape index: {1}]
  %5 = xla_tuple %s3, %s4
  %s6 = sld [smem:[#allocation0]]
  $region30: #{_bigram_forward_jit.1} parent=0
    _
  %s8 = ssub.s32 1, %s6
  %s9 = scalar_select 0, %s8, %s6
  // Predicated region
  $region2: #{_bigram_forward_jit.1} parent=0 // pred_check
    _
  $region3: #{_bigram_forward_jit.1} parent=0 // pred_check_branch
    %11 = sbr.rel (0) target = $region5
  $region4: #{_bigram_forward_jit.1} parent=0 // pred_region
    _
  $region5: #{_bigram_forward_jit.1} parent=0 // pred_fallthru
    _
  // Predicated region
  $region6: #{_bigram_forward_jit.1} parent=0 // pred_check
    _
  $region7: #{_bigram_forward_jit.1} parent=0 // pred_check_branch
    %13 = sbr.rel (0) target = $region9
  $region8: #{_bigram_forward_jit.1} parent=0 // pred_region
    _
  $region9: #{_bigram_forward_jit.1} parent=0 // pred_fallthru
    _
  // Predicated region
  $region10: #{_bigram_forward_jit.1} parent=0 // pred_check
    _
  $region11: #{_bigram_forward_jit.1} parent=0 // pred_check_branch
    %15 = sbr.rel (0) target = $region13
  $region12: #{_bigram_forward_jit.1} parent=0 // pred_region
    _
  $region13: #{_bigram_forward_jit.1} parent=0 // pred_fallthru
    _
  %v16 = vld [vmem:[%s0] sm:$0xff]
  %v17 = vld [vmem:[%s0 + $0x8] sm:$0xff]
  %v18 = vld [vmem:[%s1] sm:$0xff]
  %v19 = vld [vmem:[%s1 + $0x8] sm:$0xff]
  %v20 = vlaneseq
  %v21 = vand.u32 %v20, 127
  %22 = vset.pattern.permute.xlu0 0
  %23 = vperm.xlu0 %22, %v16
  %v24 = vpop.permute.xlu0 %23
  %25 = vset.pattern.permute.xlu0 0
  %26 = vperm.xlu0 %25, %v17
  %v27 = vpop.permute.xlu0 %26
  %vm28 = vcmp.eq.s32.totalorder %v21, %v24
  %vm29 = vcmp.eq.s32.totalorder %v21, %v27
  %v30 = vsel %vm28, 1, 0
  %v31 = vsel %vm29, 1, 0
  %v32 = vcvt.s32.f32 %v30
  %v33 = vcvt.s32.f32 %v31
  %v34 = vld [vmem:[%s2] sm:$0xff]
  %v35 = vld [vmem:[%s2 + $0x8] sm:$0xff]
  %v36 = vld [vmem:[%s2 + $0x10] sm:$0xff]
  %v37 = vld [vmem:[%s2 + $0x18] sm:$0xff]
  %v38 = vld [vmem:[%s2 + $0x20] sm:$0xff]
  %v39 = vld [vmem:[%s2 + $0x28] sm:$0xff]
  %v40 = vld [vmem:[%s2 + $0x30] sm:$0xff]
  %v41 = vld [vmem:[%s2 + $0x38] sm:$0xff]
  %v42 = vld [vmem:[%s2 + $0x40] sm:$0xff]
  %v43 = vld [vmem:[%s2 + $0x48] sm:$0xff]
  %v44 = vld [vmem:[%s2 + $0x50] sm:$0xff]
  %v45 = vld [vmem:[%s2 + $0x58] sm:$0xff]
  %v46 = vld [vmem:[%s2 + $0x60] sm:$0xff]
  %v47 = vld [vmem:[%s2 + $0x68] sm:$0xff]
  %v48 = vld [vmem:[%s2 + $0x70] sm:$0xff]
  %v49 = vld [vmem:[%s2 + $0x78] sm:$0xff]
  %50 = vmatprep.subr.mxu0 0.0
  %51 = vmatpush1.msra.mxu0 %v34
  %52 = vmatprep.subr.mxu0 0.0
  %53 = vmatpush1.msra.mxu0 %v35
  %54 = vmatprep.subr.mxu0 0.0
  %55 = vmatpush1.msra.mxu0 %v36
  %56 = vmatprep.subr.mxu0 0.0
  %57 = vmatpush1.msra.mxu0 %v37
  %58 = vmatprep.subr.mxu0 0.0
  %59 = vmatpush1.msra.mxu0 %v38
  %60 = vmatprep.subr.mxu0 0.0
  %61 = vmatpush1.msra.mxu0 %v39
  %62 = vmatprep.subr.mxu0 0.0
  %63 = vmatpush1.msra.mxu0 %v40
  %64 = vmatprep.subr.mxu0 0.0
  %65 = vmatpush1.msra.mxu0 %v41
  %66 = vmatprep.subr.mxu0 0.0
  %67 = vmatpush1.msra.mxu0 %v42
  %68 = vmatprep.subr.mxu0 0.0
  %69 = vmatpush1.msra.mxu0 %v43
  %70 = vmatprep.subr.mxu0 0.0
  %71 = vmatpush1.msra.mxu0 %v44
  %72 = vmatprep.subr.mxu0 0.0
  %73 = vmatpush1.msra.mxu0 %v45
  %74 = vmatprep.subr.mxu0 0.0
  %75 = vmatpush1.msra.mxu0 %v46
  %76 = vmatprep.subr.mxu0 0.0
  %77 = vmatpush1.msra.mxu0 %v47
  %78 = vmatprep.subr.mxu0 0.0
  %79 = vmatpush1.msra.mxu0 %v48
  %80 = vmatprep.subr.mxu0 0.0
  %81 = vmatpush1.msra.mxu0 %v49
  %82 = vmatprep.subr.mxu0 0.0
  %83 = vmatpush1.msra.mxu0 0.0
  %84 = vmatprep.subr.mxu0 0.0
  %85 = vmatpush1.msra.mxu0 0.0
  %86 = vmatprep.subr.mxu0 0.0
  %87 = vmatpush1.msra.mxu0 0.0
  %88 = vmatprep.subr.mxu0 0.0
  %89 = vmatpush1.msra.mxu0 0.0
  %90 = vmatprep.subr.mxu0 0.0
  %91 = vmatpush1.msra.mxu0 0.0
  %92 = vmatprep.subr.mxu0 0.0
  %93 = vmatpush1.msra.mxu0 0.0
  %94 = vmatprep.subr.mxu0 0.0
  %95 = vmatpush1.msra.mxu0 0.0
  %96 = vmatprep.subr.mxu0 0.0
  %97 = vmatpush1.msra.mxu0 0.0
  %98 = vmatprep.subr.mxu0 0.0
  %99 = vmatpush1.msra.mxu0 0.0
  %100 = vmatprep.subr.mxu0 0.0
  %101 = vmatpush1.msra.mxu0 0.0
  %102 = vmatprep.subr.mxu0 0.0
  %103 = vmatpush1.msra.mxu0 0.0
  %104 = vmatprep.subr.mxu0 0.0
  %105 = vmatpush1.msra.mxu0 0.0
  %106 = vmatprep.subr.mxu0 0.0
  %107 = vmatpush1.msra.mxu0 0.0
  %108 = vmatprep.subr.mxu0 0.0
  %109 = vmatpush1.msra.mxu0 0.0
  %110 = vmatprep.subr.mxu0 0.0
  %111 = vmatpush1.msra.mxu0 0.0
  %112 = vmatprep.subr.mxu0 0.0
  %113 = vmatpush1.msra.mxu0 0.0
  %114 = vmatprep.mubr.f32.mxu0 0.0
  %115 = vmatmul.mubr.f32.gmra.mrb[0].mxu0 %v32
  %v116 = vpop.f32.mrb[0].mxu0
  %v117 = vadd.f32 0.0, %v116
  %v118 = vpop.f32.mrb[0].mxu0
  %119 = vmatprep.mubr.f32.mxu0 0.0
  %120 = vmatmul.mubr.f32.gmra.mrb[0].mxu0 %v33
  %v121 = vpop.f32.mrb[0].mxu0
  %v122 = vadd.f32 0.0, %v121
  %v123 = vpop.f32.mrb[0].mxu0
  %124 = vdwg.mxu0
  %125 = vst [vmem:[%s3] sm:$0xff] %v117
  %126 = vst [vmem:[%s3 + $0x8] sm:$0xff] %v122
  %vm127 = vcmp.lt.s32.totalorder %v21, 65
  %v128 = vsel %vm127, %v117, -inf
  %v129 = vsel %vm127, %v122, -inf
  %130 = vmax.xlane.f32.xlu0 %v128
  %v131 = vpop.xlane.xlu0 %130
  %132 = vmax.xlane.f32.xlu0 %v129
  %v133 = vpop.xlane.xlu0 %132
  %v134 = vsub.f32 %v128, %v131
  %v135 = vsub.f32 %v129, %v133
  %v136 = vmul.f32 %v134, 1.442695
  %v137 = vpow.pop %v136
  %v138 = vmul.f32 %v135, 1.442695
  %v139 = vpow.pop %v138
  %140 = vadd.xlane.f32.xlu0 %v137
  %v141 = vpop.xlane.xlu0 %140
  %142 = vadd.xlane.f32.xlu0 %v139
  %v143 = vpop.xlane.xlu0 %142
  %v144 = vlog2.pop %v141
  %v145 = vmul.f32 %v144, 0.6931472
  %v146 = vlog2.pop %v143
  %v147 = vmul.f32 %v146, 0.6931472
  %v148 = vadd.f32 %v131, %v145
  %v149 = vadd.f32 %v133, %v147
  %150 = vset.pattern.permute.xlu0 0
  %151 = vperm.xlu0 %150, %v18
  %v152 = vpop.permute.xlu0 %151
  %153 = vset.pattern.permute.xlu0 0
  %154 = vperm.xlu0 %153, %v19
  %v155 = vpop.permute.xlu0 %154
  %vm156 = vcmp.eq.s32.totalorder %v21, %v152
  %vm157 = vcmp.eq.s32.totalorder %v21, %v155
  %v158 = vsel %vm156, %v117, 0.0
  %v159 = vsel %vm157, %v122, 0.0
  %160 = vadd.xlane.f32.xlu0 %v158
  %v161 = vpop.xlane.xlu0 %160
  %162 = vadd.xlane.f32.xlu0 %v159
  %v163 = vpop.xlane.xlu0 %162
  %v164 = vsub.f32 %v148, %v161
  %v165 = vsub.f32 %v149, %v163
  %vm166 = vcmask 7168
  %167 = vst.msk [vmem:[%s4] sm:$0xff] %vm166, %v164
  %168 = vst.msk [vmem:[%s4 + $0x8] sm:$0xff] %vm166, %v165
  // Predicated region
  $region14: #{_bigram_forward_jit.1} parent=0 // pred_check
    _
  $region15: #{_bigram_forward_jit.1} parent=0 // pred_check_branch
    %170 = sbr.rel (0) target = $region17
  $region16: #{_bigram_forward_jit.1} parent=0 // pred_region
    _
  $region17: #{_bigram_forward_jit.1} parent=0 // pred_fallthru
    _
  // Predicated region
  $region18: #{_bigram_forward_jit.1} parent=0 // pred_check
    _
  $region19: #{_bigram_forward_jit.1} parent=0 // pred_check_branch
    %172 = sbr.rel (0) target = $region21
  $region20: #{_bigram_forward_jit.1} parent=0 // pred_region
    _
  $region21: #{_bigram_forward_jit.1} parent=0 // pred_fallthru
    _
  // Predicated region
  $region22: #{_bigram_forward_jit.1} parent=0 // pred_check
    _
  $region23: #{_bigram_forward_jit.1} parent=0 // pred_check_branch
    %174 = sbr.rel (0) target = $region25
  $region24: #{_bigram_forward_jit.1} parent=0 // pred_region
    _
  $region25: #{_bigram_forward_jit.1} parent=0 // pred_fallthru
    _
  // Predicated region
  $region26: #{_bigram_forward_jit.1} parent=0 // pred_check
    _
  $region27: #{_bigram_forward_jit.1} parent=0 // pred_check_branch
    %176 = sbr.rel (0) target = $region29
  $region28: #{_bigram_forward_jit.1} parent=0 // pred_region
    _
  $region29: #{_bigram_forward_jit.1} parent=0 // pred_fallthru
    _

</llo_original>
